<compile_context>
chip_gen: v7x
topology: tpu7x:2x2x1
jax: 0.10.0
libtpu: 0.0.40
codegen_flags: <defaults>
</compile_context>

<pallas_src>
import functools

import numpy as np
import jax
import jax.numpy as jnp
from jax.experimental import pallas as pl
from jax.experimental.pallas import tpu as pltpu


def _lightconv_kernel(k, W, HW, margin,
                      x_ref, w1_ref, b1_ref, dw_ref, b2_ref, cmask_ref,
                      o_ref, yp_ref):
    """One image per grid step.
    x_ref:  (1, C1, HW)    input image, flattened spatial on lanes
    w1_ref: (C2, C1)       1x1 conv weight with BN1 scale folded in
    b1_ref: (C2, 1)        BN1 bias
    dw_ref: (C2, k*k)      depthwise weight with BN2 scale folded in
    b2_ref: (C2, 1)        BN2 bias
    cmask_ref: (k, HW)     per-dx column-validity mask (handles row wrap-around)
    o_ref:  (1, C2, HW)    output
    yp_ref: (C2, HW+2*margin) f32 scratch (zero margins emulate spatial zero padding)
    """
    p = k // 2
    C2 = o_ref.shape[1]

    # ---- pointwise 1x1 conv (MXU) + BN1 bias ----
    x2d = x_ref[0]                                                        # (C1, HW)
    y = jnp.dot(w1_ref[...], x2d, preferred_element_type=jnp.float32)    # (C2, HW)
    y = y + b1_ref[...]

    # ---- stage into zero-margined flat scratch (margins = spatial zero padding) ----
    if margin > 0:
        yp_ref[:, 0:margin] = jnp.zeros((C2, margin), jnp.float32)
        yp_ref[:, margin + HW:margin + HW + margin] = jnp.zeros(
            (C2, margin), jnp.float32)
    yp_ref[:, margin:margin + HW] = y

    # ---- depthwise k x k conv: k*k statically shifted taps ----
    acc = None
    for dx in range(k):
        part = None
        for dy in range(k):
            s = (dy - p) * W + (dx - p)                 # flat shift for this tap
            tap = yp_ref[:, margin + s:margin + s + HW]  # (C2, HW)
            t = dy * k + dx
            contrib = tap * dw_ref[:, t:t + 1]           # per-channel weight
            part = contrib if part is None else part + contrib
        if dx != p:
            # zero out lanes where the horizontal tap crossed a row boundary
            part = part * cmask_ref[dx:dx + 1, :]
        acc = part if acc is None else acc + part

    # ---- BN2 bias + ReLU, lane-dense store ----
    z = acc + b2_ref[...]
    o_ref[0] = jnp.maximum(z, 0.0).astype(o_ref.dtype)


def light_conv(x_nchw, w1_oihw, bn1_scale, bn1_bias, dw_oihw, bn2_scale, bn2_bias):
    """LightConv forward.

    x_nchw:    (B, C1, H, W)
    w1_oihw:   (C2, C1, 1, 1)   conv1 (1x1) weight, bias=False
    dw_oihw:   (C2, 1, k, k)    conv2 depthwise weight, bias=False
    bn*_scale / bn*_bias: (C2,) folded eval-mode BatchNorm (scale = gamma/sqrt(var+eps),
                                bias = beta - mean*scale)
    Returns (B, C2, H, W) in x's dtype.
    """
    B, C1, H, W = x_nchw.shape
    C2 = w1_oihw.shape[0]
    k = dw_oihw.shape[-1]
    p = k // 2
    HW = H * W
    margin = p * W + p

    # Free layout moves only (no HBM transpose passes): NCHW -> (B, C, H*W).
    x_flat = x_nchw.reshape(B, C1, HW)

    # Fold BN scales into the conv weights once (tiny, done outside the kernel).
    w1 = (w1_oihw.reshape(C2, C1) * bn1_scale[:, None]).astype(jnp.float32)
    dw = (dw_oihw.reshape(C2, k * k) * bn2_scale[:, None]).astype(jnp.float32)
    b1 = bn1_bias.reshape(C2, 1).astype(jnp.float32)
    b2 = bn2_bias.reshape(C2, 1).astype(jnp.float32)

    # Static column-validity mask: for flat index i (w = i mod W) and horizontal
    # offset dx, the tap is valid iff 0 <= w + dx - p < W.
    w_idx = np.arange(HW) % W
    cmask = np.stack(
        [((w_idx + dx - p >= 0) & (w_idx + dx - p < W)).astype(np.float32)
         for dx in range(k)], axis=0)                                   # (k, HW)
    cmask = jnp.asarray(cmask)

    # Explicit VMEM budget (double-buffered in/out blocks + scratch + params),
    # clamped so it is safe on v5e/v6e (128 MiB) and v7x (64 MiB physical).
    itemsize = x_nchw.dtype.itemsize
    est = 2 * (C1 + C2) * HW * itemsize            # double-buffered in/out blocks
    est += C2 * (HW + 2 * margin) * 4              # flat scratch
    est += 2 * 4 * (C2 * C1 + C2 * k * k + 2 * C2 + k * HW)   # params
    vmem_limit = int(min(max(4 * est, 16 * 1024 * 1024), 48 * 1024 * 1024))

    kernel = functools.partial(_lightconv_kernel, k, W, HW, margin)

    out_flat = pl.pallas_call(
        kernel,
        out_shape=jax.ShapeDtypeStruct((B, C2, HW), x_nchw.dtype),
        grid_spec=pltpu.PrefetchScalarGridSpec(
            num_scalar_prefetch=0,
            grid=(B,),
            in_specs=[
                pl.BlockSpec((1, C1, HW), lambda b: (b, 0, 0)),   # x image
                pl.BlockSpec((C2, C1), lambda b: (0, 0)),         # folded 1x1 weight
                pl.BlockSpec((C2, 1), lambda b: (0, 0)),          # BN1 bias
                pl.BlockSpec((C2, k * k), lambda b: (0, 0)),      # folded DW weight
                pl.BlockSpec((C2, 1), lambda b: (0, 0)),          # BN2 bias
                pl.BlockSpec((k, HW), lambda b: (0, 0)),          # column masks
            ],
            out_specs=pl.BlockSpec((1, C2, HW), lambda b: (b, 0, 0)),
            scratch_shapes=[pltpu.VMEM((C2, HW + 2 * margin), jnp.float32)],
        ),
        compiler_params=pltpu.CompilerParams(
            dimension_semantics=("parallel",),
            vmem_limit_bytes=vmem_limit,
        ),
    )(x_flat, w1, b1, dw, b2, cmask)

    return out_flat.reshape(B, C2, H, W)


def _reference(x, w1_oihw, s1, b1, dw_oihw, s2, b2):
    """Pure-JAX reference matching the PyTorch forward (eval-mode BN)."""
    C2 = w1_oihw.shape[0]
    k = dw_oihw.shape[-1]
    p = k // 2
    dn = ("NCHW", "OIHW", "NCHW")
    y = jax.lax.conv_general_dilated(
        x, w1_oihw, (1, 1), "VALID", dimension_numbers=dn,
        precision=jax.lax.Precision.HIGHEST)
    y = y * s1[None, :, None, None] + b1[None, :, None, None]
    z = jax.lax.conv_general_dilated(
        y, dw_oihw, (1, 1), [(p, p), (p, p)], dimension_numbers=dn,
        feature_group_count=C2, precision=jax.lax.Precision.HIGHEST)
    z = z * s2[None, :, None, None] + b2[None, :, None, None]
    return jnp.maximum(z, 0.0)


if __name__ == "__main__":
    B, C1, C2, H, W, K = 2, 4, 8, 16, 16, 3

    key = jax.random.PRNGKey(0)
    ks = jax.random.split(key, 11)
    x = jax.random.normal(ks[0], (B, C1, H, W), dtype=jnp.float32)

    # Conv2d(C1, C2, 1, bias=False)  and  depthwise Conv2d(C2, C2, K, groups=C2, bias=False)
    w1 = 0.2 * jax.random.normal(ks[1], (C2, C1, 1, 1), dtype=jnp.float32)
    dw = 0.2 * jax.random.normal(ks[2], (C2, 1, K, K), dtype=jnp.float32)

    def fold_bn(gamma, beta, mean, var, eps=1e-5):
        scale = gamma * jax.lax.rsqrt(var + eps)
        return scale, beta - mean * scale

    g1 = 1.0 + 0.1 * jax.random.normal(ks[3], (C2,), dtype=jnp.float32)
    be1 = 0.1 * jax.random.normal(ks[4], (C2,), dtype=jnp.float32)
    m1 = 0.1 * jax.random.normal(ks[5], (C2,), dtype=jnp.float32)
    v1 = jnp.abs(1.0 + 0.1 * jax.random.normal(ks[6], (C2,), dtype=jnp.float32))
    g2 = 1.0 + 0.1 * jax.random.normal(ks[7], (C2,), dtype=jnp.float32)
    be2 = 0.1 * jax.random.normal(ks[8], (C2,), dtype=jnp.float32)
    m2 = 0.1 * jax.random.normal(ks[9], (C2,), dtype=jnp.float32)
    v2 = jnp.abs(1.0 + 0.1 * jax.random.normal(ks[10], (C2,), dtype=jnp.float32))

    s1, b1 = fold_bn(g1, be1, m1, v1)
    s2, b2 = fold_bn(g2, be2, m2, v2)

    out = light_conv(x, w1, s1, b1, dw, s2, b2)
    out = jax.block_until_ready(out)

    ref = _reference(x, w1, s1, b1, dw, s2, b2)
    assert out.shape == (B, C2, H, W) and out.dtype == x.dtype
    assert jnp.allclose(out, ref, atol=1e-4, rtol=1e-4), float(jnp.max(jnp.abs(out - ref)))

    print("KERNEL_OK")
</pallas_src>

<mosaic_0001>
module attributes {stable_mosaic.version = 11 : i64} {
  func.func @_lightconv_kernel(%arg0: i32, %arg1: memref<1x4x256xf32, #tpu.memory_space<vmem>>, %arg2: memref<8x4xf32, #tpu.memory_space<vmem>>, %arg3: memref<8x1xf32, #tpu.memory_space<vmem>>, %arg4: memref<8x9xf32, #tpu.memory_space<vmem>>, %arg5: memref<8x1xf32, #tpu.memory_space<vmem>>, %arg6: memref<3x256xf32, #tpu.memory_space<vmem>>, %arg7: memref<1x8x256xf32, #tpu.memory_space<vmem>>, %arg8: memref<8x290xf32, #tpu.memory_space<vmem>>) attributes {dimension_semantics = [#tpu.dimension_semantics<parallel>], iteration_bounds = array<i64: 2>, scalar_prefetch = 0 : i64, scratch_operands = 1 : i64, tpu.core_type = #tpu.core_type<tc>, window_params = [{transform_indices = @transform_0, window_bounds = array<i64: 1, 4, 256>}, {pipeline_mode = #tpu.pipeline_mode<synchronous>, transform_indices = @transform_1, window_bounds = array<i64: 8, 4>}, {pipeline_mode = #tpu.pipeline_mode<synchronous>, transform_indices = @transform_2, window_bounds = array<i64: 8, 1>}, {pipeline_mode = #tpu.pipeline_mode<synchronous>, transform_indices = @transform_3, window_bounds = array<i64: 8, 9>}, {pipeline_mode = #tpu.pipeline_mode<synchronous>, transform_indices = @transform_4, window_bounds = array<i64: 8, 1>}, {pipeline_mode = #tpu.pipeline_mode<synchronous>, transform_indices = @transform_5, window_bounds = array<i64: 3, 256>}, {transform_indices = @transform_6, window_bounds = array<i64: 1, 8, 256>}]} {
    %c0 = arith.constant 0 : index
    %c0_0 = arith.constant 0 : index
    %c0_1 = arith.constant 0 : index
    %0 = vector.load %arg1[%c0, %c0_0, %c0_1] : memref<1x4x256xf32, #tpu.memory_space<vmem>>, vector<1x4x256xf32>
    %1 = vector.shape_cast %0 : vector<1x4x256xf32> to vector<4x256xf32>
    %c0_2 = arith.constant 0 : index
    %c0_3 = arith.constant 0 : index
    %2 = vector.load %arg2[%c0_2, %c0_3] : memref<8x4xf32, #tpu.memory_space<vmem>>, vector<8x4xf32>
    %cst = arith.constant dense<0.000000e+00> : vector<8x256xf32>
    %3 = tpu.matmul %2, %1, %cst {dimension_numbers = #tpu.dot_dimension_numbers<[1], [0], [0], [1], [0, 0, 1, 1], [], []>} : vector<8x4xf32>, vector<4x256xf32>, vector<8x256xf32> -> vector<8x256xf32>
    %c0_4 = arith.constant 0 : index
    %c0_5 = arith.constant 0 : index
    %4 = vector.load %arg3[%c0_4, %c0_5] : memref<8x1xf32, #tpu.memory_space<vmem>>, vector<8x1xf32>
    %5 = vector.broadcast %4 : vector<8x1xf32> to vector<8x256xf32>
    %6 = arith.addf %3, %5 : vector<8x256xf32>
    %cst_6 = arith.constant 0.000000e+00 : f32
    %7 = vector.broadcast %cst_6 : f32 to vector<8x17xf32>
    %c0_7 = arith.constant 0 : index
    %c0_8 = arith.constant 0 : index
    %8 = vector.load %arg8[%c0_7, %c0_8] : memref<8x290xf32, #tpu.memory_space<vmem>>, vector<8x17xf32>
    tpu.vector_store %arg8[%c0_7, %c0_8], %7 {strides = array<i32>} : memref<8x290xf32, #tpu.memory_space<vmem>>, vector<8x17xf32>,
    %cst_9 = arith.constant 0.000000e+00 : f32
    %9 = vector.broadcast %cst_9 : f32 to vector<8x17xf32>
    %c0_10 = arith.constant 0 : index
    %c273 = arith.constant 273 : index
    %10 = vector.load %arg8[%c0_10, %c273] : memref<8x290xf32, #tpu.memory_space<vmem>>, vector<8x17xf32>
    tpu.vector_store %arg8[%c0_10, %c273], %9 {strides = array<i32>} : memref<8x290xf32, #tpu.memory_space<vmem>>, vector<8x17xf32>,
    %c0_11 = arith.constant 0 : index
    %c17 = arith.constant 17 : index
    %11 = vector.load %arg8[%c0_11, %c17] : memref<8x290xf32, #tpu.memory_space<vmem>>, vector<8x256xf32>
    tpu.vector_store %arg8[%c0_11, %c17], %6 {strides = array<i32>} : memref<8x290xf32, #tpu.memory_space<vmem>>, vector<8x256xf32>,
    %c0_12 = arith.constant 0 : index
    %c0_13 = arith.constant 0 : index
    %12 = vector.load %arg8[%c0_12, %c0_13] : memref<8x290xf32, #tpu.memory_space<vmem>>, vector<8x256xf32>
    %c0_14 = arith.constant 0 : index
    %c0_15 = arith.constant 0 : index
    %13 = vector.load %arg4[%c0_14, %c0_15] : memref<8x9xf32, #tpu.memory_space<vmem>>, vector<8x1xf32>
    %14 = vector.broadcast %13 : vector<8x1xf32> to vector<8x256xf32>
    %15 = arith.mulf %12, %14 : vector<8x256xf32>
    %c0_16 = arith.constant 0 : index
    %c16 = arith.constant 16 : index
    %16 = vector.load %arg8[%c0_16, %c16] : memref<8x290xf32, #tpu.memory_space<vmem>>, vector<8x256xf32>
    %c0_17 = arith.constant 0 : index
    %c3 = arith.constant 3 : index
    %17 = vector.load %arg4[%c0_17, %c3] : memref<8x9xf32, #tpu.memory_space<vmem>>, vector<8x1xf32>
    %18 = vector.broadcast %17 : vector<8x1xf32> to vector<8x256xf32>
    %19 = arith.mulf %16, %18 : vector<8x256xf32>
    %20 = arith.addf %15, %19 : vector<8x256xf32>
    %c0_18 = arith.constant 0 : index
    %c32 = arith.constant 32 : index
    %21 = vector.load %arg8[%c0_18, %c32] : memref<8x290xf32, #tpu.memory_space<vmem>>, vector<8x256xf32>
    %c0_19 = arith.constant 0 : index
    %c6 = arith.constant 6 : index
    %22 = vector.load %arg4[%c0_19, %c6] : memref<8x9xf32, #tpu.memory_space<vmem>>, vector<8x1xf32>
    %23 = vector.broadcast %22 : vector<8x1xf32> to vector<8x256xf32>
    %24 = arith.mulf %21, %23 : vector<8x256xf32>
    %25 = arith.addf %20, %24 : vector<8x256xf32>
    %c0_20 = arith.constant 0 : index
    %c0_21 = arith.constant 0 : index
    %26 = vector.load %arg6[%c0_20, %c0_21] : memref<3x256xf32, #tpu.memory_space<vmem>>, vector<1x256xf32>
    %27 = vector.broadcast %26 : vector<1x256xf32> to vector<8x256xf32>
    %28 = arith.mulf %25, %27 : vector<8x256xf32>
    %c0_22 = arith.constant 0 : index
    %c1 = arith.constant 1 : index
    %29 = vector.load %arg8[%c0_22, %c1] : memref<8x290xf32, #tpu.memory_space<vmem>>, vector<8x256xf32>
    %c0_23 = arith.constant 0 : index
    %c1_24 = arith.constant 1 : index
    %30 = vector.load %arg4[%c0_23, %c1_24] : memref<8x9xf32, #tpu.memory_space<vmem>>, vector<8x1xf32>
    %31 = vector.broadcast %30 : vector<8x1xf32> to vector<8x256xf32>
    %32 = arith.mulf %29, %31 : vector<8x256xf32>
    %c0_25 = arith.constant 0 : index
    %c17_26 = arith.constant 17 : index
    %33 = vector.load %arg8[%c0_25, %c17_26] : memref<8x290xf32, #tpu.memory_space<vmem>>, vector<8x256xf32>
    %c0_27 = arith.constant 0 : index
    %c4 = arith.constant 4 : index
    %34 = vector.load %arg4[%c0_27, %c4] : memref<8x9xf32, #tpu.memory_space<vmem>>, vector<8x1xf32>
    %35 = vector.broadcast %34 : vector<8x1xf32> to vector<8x256xf32>
    %36 = arith.mulf %33, %35 : vector<8x256xf32>
    %37 = arith.addf %32, %36 : vector<8x256xf32>
    %c0_28 = arith.constant 0 : index
    %c33 = arith.constant 33 : index
    %38 = vector.load %arg8[%c0_28, %c33] : memref<8x290xf32, #tpu.memory_space<vmem>>, vector<8x256xf32>
    %c0_29 = arith.constant 0 : index
    %c7 = arith.constant 7 : index
    %39 = vector.load %arg4[%c0_29, %c7] : memref<8x9xf32, #tpu.memory_space<vmem>>, vector<8x1xf32>
    %40 = vector.broadcast %39 : vector<8x1xf32> to vector<8x256xf32>
    %41 = arith.mulf %38, %40 : vector<8x256xf32>
    %42 = arith.addf %37, %41 : vector<8x256xf32>
    %43 = arith.addf %28, %42 : vector<8x256xf32>
    %c0_30 = arith.constant 0 : index
    %c2 = arith.constant 2 : index
    %44 = vector.load %arg8[%c0_30, %c2] : memref<8x290xf32, #tpu.memory_space<vmem>>, vector<8x256xf32>
    %c0_31 = arith.constant 0 : index
    %c2_32 = arith.constant 2 : index
    %45 = vector.load %arg4[%c0_31, %c2_32] : memref<8x9xf32, #tpu.memory_space<vmem>>, vector<8x1xf32>
    %46 = vector.broadcast %45 : vector<8x1xf32> to vector<8x256xf32>
    %47 = arith.mulf %44, %46 : vector<8x256xf32>
    %c0_33 = arith.constant 0 : index
    %c18 = arith.constant 18 : index
    %48 = vector.load %arg8[%c0_33, %c18] : memref<8x290xf32, #tpu.memory_space<vmem>>, vector<8x256xf32>
    %c0_34 = arith.constant 0 : index
    %c5 = arith.constant 5 : index
    %49 = vector.load %arg4[%c0_34, %c5] : memref<8x9xf32, #tpu.memory_space<vmem>>, vector<8x1xf32>
    %50 = vector.broadcast %49 : vector<8x1xf32> to vector<8x256xf32>
    %51 = arith.mulf %48, %50 : vector<8x256xf32>
    %52 = arith.addf %47, %51 : vector<8x256xf32>
    %c0_35 = arith.constant 0 : index
    %c34 = arith.constant 34 : index
    %53 = vector.load %arg8[%c0_35, %c34] : memref<8x290xf32, #tpu.memory_space<vmem>>, vector<8x256xf32>
    %c0_36 = arith.constant 0 : index
    %c8 = arith.constant 8 : index
    %54 = vector.load %arg4[%c0_36, %c8] : memref<8x9xf32, #tpu.memory_space<vmem>>, vector<8x1xf32>
    %55 = vector.broadcast %54 : vector<8x1xf32> to vector<8x256xf32>
    %56 = arith.mulf %53, %55 : vector<8x256xf32>
    %57 = arith.addf %52, %56 : vector<8x256xf32>
    %c2_37 = arith.constant 2 : index
    %c0_38 = arith.constant 0 : index
    %58 = vector.load %arg6[%c2_37, %c0_38] : memref<3x256xf32, #tpu.memory_space<vmem>>, vector<1x256xf32>
    %59 = vector.broadcast %58 : vector<1x256xf32> to vector<8x256xf32>
    %60 = arith.mulf %57, %59 : vector<8x256xf32>
    %61 = arith.addf %43, %60 : vector<8x256xf32>
    %c0_39 = arith.constant 0 : index
    %c0_40 = arith.constant 0 : index
    %62 = vector.load %arg5[%c0_39, %c0_40] : memref<8x1xf32, #tpu.memory_space<vmem>>, vector<8x1xf32>
    %63 = vector.broadcast %62 : vector<8x1xf32> to vector<8x256xf32>
    %64 = arith.addf %61, %63 : vector<8x256xf32>
    %cst_41 = arith.constant 0.000000e+00 : f32
    %65 = vector.broadcast %cst_41 : f32 to vector<8x256xf32>
    %66 = arith.maximumf %64, %65 : vector<8x256xf32>
    %c0_42 = arith.constant 0 : index
    %c0_43 = arith.constant 0 : index
    %c0_44 = arith.constant 0 : index
    %67 = vector.load %arg7[%c0_42, %c0_43, %c0_44] : memref<1x8x256xf32, #tpu.memory_space<vmem>>, vector<1x8x256xf32>
    %68 = vector.shape_cast %67 : vector<1x8x256xf32> to vector<8x256xf32>
    %69 = vector.shape_cast %66 : vector<8x256xf32> to vector<1x8x256xf32>
    tpu.vector_store %arg7[%c0_42, %c0_43, %c0_44], %69 {strides = array<i32>} : memref<1x8x256xf32, #tpu.memory_space<vmem>>, vector<1x8x256xf32>,
    return
  }
  func.func @transform_0(%arg0: i32) -> (i32, i32, i32) {
    %c0_i32 = arith.constant 0 : i32
    %c0_i32_0 = arith.constant 0 : i32
    %c0_i32_1 = arith.constant 0 : i32
    return %arg0, %c0_i32, %c0_i32_0 : i32, i32, i32
  }
  func.func @transform_1(%arg0: i32) -> (i32, i32) {
    %c0_i32 = arith.constant 0 : i32
    %c0_i32_0 = arith.constant 0 : i32
    %c0_i32_1 = arith.constant 0 : i32
    return %c0_i32, %c0_i32_0 : i32, i32
  }
  func.func @transform_2(%arg0: i32) -> (i32, i32) {
    %c0_i32 = arith.constant 0 : i32
    %c0_i32_0 = arith.constant 0 : i32
    %c0_i32_1 = arith.constant 0 : i32
    return %c0_i32, %c0_i32_0 : i32, i32
  }
  func.func @transform_3(%arg0: i32) -> (i32, i32) {
    %c0_i32 = arith.constant 0 : i32
    %c0_i32_0 = arith.constant 0 : i32
    %c0_i32_1 = arith.constant 0 : i32
    return %c0_i32, %c0_i32_0 : i32, i32
  }
  func.func @transform_4(%arg0: i32) -> (i32, i32) {
    %c0_i32 = arith.constant 0 : i32
    %c0_i32_0 = arith.constant 0 : i32
    %c0_i32_1 = arith.constant 0 : i32
    return %c0_i32, %c0_i32_0 : i32, i32
  }
  func.func @transform_5(%arg0: i32) -> (i32, i32) {
    %c0_i32 = arith.constant 0 : i32
    %c0_i32_0 = arith.constant 0 : i32
    %c0_i32_1 = arith.constant 0 : i32
    return %c0_i32, %c0_i32_0 : i32, i32
  }
  func.func @transform_6(%arg0: i32) -> (i32, i32, i32) {
    %c0_i32 = arith.constant 0 : i32
    %c0_i32_0 = arith.constant 0 : i32
    %c0_i32_1 = arith.constant 0 : i32
    return %arg0, %c0_i32, %c0_i32_0 : i32, i32, i32
  }
}

</mosaic_0001>

<llo_original>
// kernel: tpu_custom_call.1
$region0: #{tpu_custom_call.1}
  #allocation0 [shape = 'u32[]', space=smem, size = 0x4, offset = 0x4, fixed_abs, tag = 'smem constant byte address 0x4 - core index']
  #allocation1 [shape = 'u32[144,128]{1,0:T(1,128)}', space=vmem, size = 0x12000, scoped, tag = 'internal scratch']
  #allocation2 [shape = 'f32[8,290]{1,0:T(8,128)}', space=vmem, size = 0x3000, scoped, tag = 'scratch operand']
  %s0 = inlined_call_operand.vmem [shape: f32[2,4,256], index: 0, kind: input, shape index: {}]
  %s1 = inlined_call_operand.vmem [shape: f32[8,4], index: 1, kind: input, shape index: {}]
  %s2 = inlined_call_operand.vmem [shape: f32[8,1], index: 2, kind: input, shape index: {}]
  %s3 = inlined_call_operand.vmem [shape: f32[8,9], index: 3, kind: input, shape index: {}]
  %s4 = inlined_call_operand.vmem [shape: f32[8,1], index: 4, kind: input, shape index: {}]
  %s5 = inlined_call_operand.vmem [shape: f32[3,256], index: 5, kind: input, shape index: {}]
  %s6 = inlined_call_operand.hbm [shape: f32[2,8,256], index: 6, kind: output, shape index: {}]
  %s7 = sld [smem:[#allocation0]]
  $region57: #{tpu_custom_call.1} parent=0
    _
  %s9 = ssub.s32 1, %s7
  %s10 = scalar_select 0, %s9, %s7
  $region1: #{tpu_custom_call.1} parent=0
    #allocation3 [shape = 'u8[16384]{0}', space=vmem, size = 0x4000, scoped, tag = 'output window, operand 0']
    #allocation4 [shape = 's32[2]{0}', space=sflag, size = 0x8, scoped, tag = 'scoped memory for tpu_custom_call.1']
    %11 = vsyncpa [#allocation4], 0
    %s12 = scalar_lea.sflag [#allocation4], 1
    %13 = vsyncpa %s12, 0
    loop: start=0, step=1, limit=4
    $region2: #{tpu_custom_call.1} parent=1 // loop_pre_header
      _
    $region3: #{tpu_custom_call.1} parent=1 // loop_header
      %s15 = sphi 0, %s19
      %p16 = scmp.ge.s32.totalorder %s15, 4
      %s25 = sphi 0, %s27
      %s28 = sphi 0, %s25
      %s29 = sphi 0, %s28
      %s45 = sphi 0, %s29
      %s49 = sphi 0, %s49
      %s51 = sphi 0, %s49
      %s52 = sphi 0, %s51
      %s66 = sphi 0, %s52
      %s70 = sphi 0, %s70
      %s72 = sphi 0, %s70
      %s73 = sphi 0, %s72
      %s87 = sphi 0, %s73
      %s91 = sphi 0, %s91
      %s93 = sphi 0, %s91
      %s94 = sphi 0, %s93
      %s108 = sphi 0, %s94
      %s112 = sphi 0, %s112
      %s114 = sphi 0, %s112
      %s115 = sphi 0, %s114
      %s129 = sphi 0, %s115
      %s133 = sphi 0, %s133
      %s135 = sphi 0, %s133
      %s136 = sphi 0, %s135
      %s150 = sphi 0, %s136
      %s156 = sphi 0, %s158
      %s159 = sphi 0, %s156
      %s160 = sphi 0, %s159
      %s176 = sphi 0, %s160
    $region4: #{tpu_custom_call.1} parent=1 // loop_header_branch
      %18 = sbr.rel (%p16) target = $region8
    $region5: #{tpu_custom_call.1} parent=1 // loop_body
      %s20 = ssub.s32 %s15, 1
      %s21 = ssub.s32 %s15, 2
      %s22 = sadd.s32 %s15, 1
      %s23 = ssub.s32 %s15, %s22
      %p24 = scmp.eq.s32.totalorder %s23, 0
      %s26 = sadd.s32 %s25, 1
      %s27 = scalar_select %p24, %s25, %s26
      %p30 = pneg %p24
      %p31 = scmp.eq.s32.totalorder %s15, 1
      %p32 = por %p30, %p31
      %p33 = scmp.ne.s32.totalorder %s25, %s28
      %p34 = scmp.eq.s32.totalorder %s15, 0
      %p35 = por %p33, %p34
      %p36 = scmp.ne.s32.totalorder %s25, %s28
      %p37 = scmp.eq.s32.totalorder %s20, 1
      %p38 = por %p36, %p37
      %p39 = scmp.ne.s32.totalorder %s28, %s29
      %p40 = scmp.eq.s32.totalorder %s20, 0
      %p41 = por %p39, %p40
      %p42 = scmp.ne.s32.totalorder %s28, %s29
      %p43 = scmp.eq.s32.totalorder %s21, 1
      %p44 = por %p42, %p43
      %p46 = scmp.ne.s32.totalorder %s29, %s45
      %p47 = scmp.eq.s32.totalorder %s21, 0
      %p48 = por %p46, %p47
      %s50 = sadd.s32 %s49, 1
      %p53 = scmp.eq.s32.totalorder %s15, 1
      %p54 = scmp.ne.s32.totalorder %s49, %s51
      %p55 = scmp.eq.s32.totalorder %s15, 0
      %p56 = por %p54, %p55
      %p57 = scmp.ne.s32.totalorder %s49, %s51
      %p58 = scmp.eq.s32.totalorder %s20, 1
      %p59 = por %p57, %p58
      %p60 = scmp.ne.s32.totalorder %s51, %s52
      %p61 = scmp.eq.s32.totalorder %s20, 0
      %p62 = por %p60, %p61
      %p63 = scmp.ne.s32.totalorder %s51, %s52
      %p64 = scmp.eq.s32.totalorder %s21, 1
      %p65 = por %p63, %p64
      %p67 = scmp.ne.s32.totalorder %s52, %s66
      %p68 = scmp.eq.s32.totalorder %s21, 0
      %p69 = por %p67, %p68
      %s71 = sadd.s32 %s70, 1
      %p74 = scmp.eq.s32.totalorder %s15, 1
      %p75 = scmp.ne.s32.totalorder %s70, %s72
      %p76 = scmp.eq.s32.totalorder %s15, 0
      %p77 = por %p75, %p76
      %p78 = scmp.ne.s32.totalorder %s70, %s72
      %p79 = scmp.eq.s32.totalorder %s20, 1
      %p80 = por %p78, %p79
      %p81 = scmp.ne.s32.totalorder %s72, %s73
      %p82 = scmp.eq.s32.totalorder %s20, 0
      %p83 = por %p81, %p82
      %p84 = scmp.ne.s32.totalorder %s72, %s73
      %p85 = scmp.eq.s32.totalorder %s21, 1
      %p86 = por %p84, %p85
      %p88 = scmp.ne.s32.totalorder %s73, %s87
      %p89 = scmp.eq.s32.totalorder %s21, 0
      %p90 = por %p88, %p89
      %s92 = sadd.s32 %s91, 1
      %p95 = scmp.eq.s32.totalorder %s15, 1
      %p96 = scmp.ne.s32.totalorder %s91, %s93
      %p97 = scmp.eq.s32.totalorder %s15, 0
      %p98 = por %p96, %p97
      %p99 = scmp.ne.s32.totalorder %s91, %s93
      %p100 = scmp.eq.s32.totalorder %s20, 1
      %p101 = por %p99, %p100
      %p102 = scmp.ne.s32.totalorder %s93, %s94
      %p103 = scmp.eq.s32.totalorder %s20, 0
      %p104 = por %p102, %p103
      %p105 = scmp.ne.s32.totalorder %s93, %s94
      %p106 = scmp.eq.s32.totalorder %s21, 1
      %p107 = por %p105, %p106
      %p109 = scmp.ne.s32.totalorder %s94, %s108
      %p110 = scmp.eq.s32.totalorder %s21, 0
      %p111 = por %p109, %p110
      %s113 = sadd.s32 %s112, 1
      %p116 = scmp.eq.s32.totalorder %s15, 1
      %p117 = scmp.ne.s32.totalorder %s112, %s114
      %p118 = scmp.eq.s32.totalorder %s15, 0
      %p119 = por %p117, %p118
      %p120 = scmp.ne.s32.totalorder %s112, %s114
      %p121 = scmp.eq.s32.totalorder %s20, 1
      %p122 = por %p120, %p121
      %p123 = scmp.ne.s32.totalorder %s114, %s115
      %p124 = scmp.eq.s32.totalorder %s20, 0
      %p125 = por %p123, %p124
      %p126 = scmp.ne.s32.totalorder %s114, %s115
      %p127 = scmp.eq.s32.totalorder %s21, 1
      %p128 = por %p126, %p127
      %p130 = scmp.ne.s32.totalorder %s115, %s129
      %p131 = scmp.eq.s32.totalorder %s21, 0
      %p132 = por %p130, %p131
      %s134 = sadd.s32 %s133, 1
      %p137 = scmp.eq.s32.totalorder %s15, 1
      %p138 = scmp.ne.s32.totalorder %s133, %s135
      %p139 = scmp.eq.s32.totalorder %s15, 0
      %p140 = por %p138, %p139
      %p141 = scmp.ne.s32.totalorder %s133, %s135
      %p142 = scmp.eq.s32.totalorder %s20, 1
      %p143 = por %p141, %p142
      %p144 = scmp.ne.s32.totalorder %s135, %s136
      %p145 = scmp.eq.s32.totalorder %s20, 0
      %p146 = por %p144, %p145
      %p147 = scmp.ne.s32.totalorder %s135, %s136
      %p148 = scmp.eq.s32.totalorder %s21, 1
      %p149 = por %p147, %p148
      %p151 = scmp.ne.s32.totalorder %s136, %s150
      %p152 = scmp.eq.s32.totalorder %s21, 0
      %p153 = por %p151, %p152
      %s154 = ssub.s32 %s15, %s22
      %p155 = scmp.eq.s32.totalorder %s154, 0
      %s157 = sadd.s32 %s156, 1
      %s158 = scalar_select %p155, %s156, %s157
      %p161 = pneg %p155
      %p162 = scmp.eq.s32.totalorder %s15, 1
      %p163 = por %p161, %p162
      %p164 = scmp.ne.s32.totalorder %s156, %s159
      %p165 = scmp.eq.s32.totalorder %s15, 0
      %p166 = por %p164, %p165
      %p167 = scmp.ne.s32.totalorder %s156, %s159
      %p168 = scmp.eq.s32.totalorder %s20, 1
      %p169 = por %p167, %p168
      %p170 = scmp.ne.s32.totalorder %s159, %s160
      %p171 = scmp.eq.s32.totalorder %s20, 0
      %p172 = por %p170, %p171
      %p173 = scmp.ne.s32.totalorder %s159, %s160
      %p174 = scmp.eq.s32.totalorder %s21, 1
      %p175 = por %p173, %p174
      %p177 = scmp.ne.s32.totalorder %s160, %s176
      %p178 = scmp.eq.s32.totalorder %s21, 0
      %p179 = por %p177, %p178
      %p180 = scmp.le.s32.totalorder 1, %s15
      %p181 = scmp.lt.s32.totalorder %s15, 3
      %p182 = pnand %p180, %p181
      %p183 = pneg %p182
      // Predicated region
      $region9: #{tpu_custom_call.1} parent=5 // pred_check
        _
      $region10: #{tpu_custom_call.1} parent=5 // pred_check_branch
        %185 = sbr.rel (%p182) target = $region12
      $region11: #{tpu_custom_call.1} parent=5 // pred_region
        %s186 = ssub.s32 %s15, 1
        // Predicated region
        $region13: #{tpu_custom_call.1} parent=11 // pred_check
          %p187 = pneg %p62
        $region14: #{tpu_custom_call.1} parent=11 // pred_check_branch
          %189 = sbr.rel (%p187) target = $region16
        $region15: #{tpu_custom_call.1} parent=11 // pred_region
          _
        $region16: #{tpu_custom_call.1} parent=11 // pred_fallthru
          _
        // Predicated region
        $region17: #{tpu_custom_call.1} parent=11 // pred_check
          %p190 = pneg %p83
        $region18: #{tpu_custom_call.1} parent=11 // pred_check_branch
          %192 = sbr.rel (%p190) target = $region20
        $region19: #{tpu_custom_call.1} parent=11 // pred_region
          _
        $region20: #{tpu_custom_call.1} parent=11 // pred_fallthru
          _
        // Predicated region
        $region21: #{tpu_custom_call.1} parent=11 // pred_check
          %p193 = pneg %p104
        $region22: #{tpu_custom_call.1} parent=11 // pred_check_branch
          %195 = sbr.rel (%p193) target = $region24
        $region23: #{tpu_custom_call.1} parent=11 // pred_region
          _
        $region24: #{tpu_custom_call.1} parent=11 // pred_fallthru
          _
        // Predicated region
        $region25: #{tpu_custom_call.1} parent=11 // pred_check
          %p196 = pneg %p125
        $region26: #{tpu_custom_call.1} parent=11 // pred_check_branch
          %198 = sbr.rel (%p196) target = $region28
        $region27: #{tpu_custom_call.1} parent=11 // pred_region
          _
        $region28: #{tpu_custom_call.1} parent=11 // pred_fallthru
          _
        // Predicated region
        $region29: #{tpu_custom_call.1} parent=11 // pred_check
          %p199 = pneg %p146
        $region30: #{tpu_custom_call.1} parent=11 // pred_check_branch
          %201 = sbr.rel (%p199) target = $region32
        $region31: #{tpu_custom_call.1} parent=11 // pred_region
          _
        $region32: #{tpu_custom_call.1} parent=11 // pred_fallthru
          _
      $region12: #{tpu_custom_call.1} parent=5 // pred_fallthru
        _
      %p202 = scmp.lt.s32.totalorder %s15, 2
      // Predicated region
      $region33: #{tpu_custom_call.1} parent=5 // pred_check
        %p203 = pneg %p202
      $region34: #{tpu_custom_call.1} parent=5 // pred_check_branch
        %205 = sbr.rel (%p203) target = $region36
      $region35: #{tpu_custom_call.1} parent=5 // pred_region
        // Predicated region
        $region37: #{tpu_custom_call.1} parent=35 // pred_check
          %p206 = pneg %p35
        $region38: #{tpu_custom_call.1} parent=35 // pred_check_branch
          %208 = sbr.rel (%p206) target = $region40
        $region39: #{tpu_custom_call.1} parent=35 // pred_region
          %p209 = scmp.lt.s32.totalorder %s15, 1
          %s210 = scalar_select %p209, %s15, 1
          %s211 = smul.addr %s210, 2
          %s212 = smul.addr %s211, 4
          %s213 = scalar_lea.vmem %s0, %s212
        $region40: #{tpu_custom_call.1} parent=35 // pred_fallthru
          _
      $region36: #{tpu_custom_call.1} parent=5 // pred_fallthru
        _
      %p214 = scmp.le.s32.totalorder 1, %s15
      %p215 = scmp.lt.s32.totalorder %s15, 3
      %p216 = pnand %p214, %p215
      %p217 = pneg %p216
      // Predicated region
      $region41: #{tpu_custom_call.1} parent=5 // pred_check
        _
      $region42: #{tpu_custom_call.1} parent=5 // pred_check_branch
        %219 = sbr.rel (%p216) target = $region44
      $region43: #{tpu_custom_call.1} parent=5 // pred_region
        %s220 = ssub.s32 %s15, 1
        %p221 = scmp.lt.s32.totalorder %s20, 1
        %s222 = scalar_select %p221, %s20, 1
        %s223 = smul.addr %s222, 2
        %s224 = smul.addr %s223, 4
        %s225 = scalar_lea.vmem %s0, %s224
        %p226 = pneg %p41
        %p227 = pneg %p38
        %p228 = pneg %p62
        %p229 = pneg %p59
        %p230 = pneg %p83
        %p231 = pneg %p80
        %p232 = pneg %p104
        %p233 = pneg %p101
        %p234 = pneg %p125
        %p235 = pneg %p122
        %p236 = pneg %p146
        %p237 = pneg %p143
        %p238 = pneg %p172
        %p239 = pneg %p169
        %s240 = sand.u32 %s159, 1
        %s241 = scalar_lea.sflag [#allocation4], %s240
        %s242 = sand.u32 %s159, 1
        %s243 = smul.addr %s242, 16
        %s244 = scalar_lea.vmem [#allocation3], %s243
        %p245 = scmp.lt.s32.totalorder %s20, 1
        %s246 = scalar_select %p245, %s20, 1
        %s247 = smul.addr %s246, 2
        %s248 = smul.addr %s247, 4
        %s249 = scalar_lea.vmem %s0, %s248
        %v250 = vld [vmem:[%s249] sm:$0xff]
        %v251 = vld [vmem:[%s1] sm:$0xff]
        %v252 = vld [vmem:[%s2] sm:$0xff]
        %254 = vset.pattern.permute.xlu0 0
        %255 = vperm.xlu0 %254, %v252
        %v256 = vpop.permute.xlu0 %255
        %v259 = vcombine.high %v250, %v250
        %vm260 = vcmask 31744
        %v262 = vsel %vm260, %v251, 0
        %vm264 = vcmask 1043456
        %v265 = vsel %vm264, %v250, 0
        %v267 = vsel %vm264, %v259, 0
        %269 = vmatprep.subr.mxu0 %v267
        %270 = vmatpush1.msra.mxu0 %v265
        %271 = vmatprep.subr.mxu0 0.0
        %272 = vmatpush1.msra.mxu0 0.0
        %273 = vmatprep.subr.mxu0 0.0
        %274 = vmatpush1.msra.mxu0 0.0
        %275 = vmatprep.subr.mxu0 0.0
        %276 = vmatpush1.msra.mxu0 0.0
        %277 = vmatprep.subr.mxu0 0.0
        %278 = vmatpush1.msra.mxu0 0.0
        %279 = vmatprep.subr.mxu0 0.0
        %280 = vmatpush1.msra.mxu0 0.0
        %281 = vmatprep.subr.mxu0 0.0
        %282 = vmatpush1.msra.mxu0 0.0
        %283 = vmatprep.subr.mxu0 0.0
        %284 = vmatpush1.msra.mxu0 0.0
        %285 = vmatprep.subr.mxu0 0.0
        %286 = vmatpush1.msra.mxu0 0.0
        %287 = vmatprep.subr.mxu0 0.0
        %288 = vmatpush1.msra.mxu0 0.0
        %289 = vmatprep.subr.mxu0 0.0
        %290 = vmatpush1.msra.mxu0 0.0
        %291 = vmatprep.subr.mxu0 0.0
        %292 = vmatpush1.msra.mxu0 0.0
        %293 = vmatprep.subr.mxu0 0.0
        %294 = vmatpush1.msra.mxu0 0.0
        %295 = vmatprep.subr.mxu0 0.0
        %296 = vmatpush1.msra.mxu0 0.0
        %297 = vmatprep.subr.mxu0 0.0
        %298 = vmatpush1.msra.mxu0 0.0
        %299 = vmatprep.subr.mxu0 0.0
        %300 = vmatpush1.msra.mxu0 0.0
        %301 = vmatprep.subr.mxu0 0.0
        %302 = vmatpush1.msra.mxu0 0.0
        %303 = vmatprep.subr.mxu0 0.0
        %304 = vmatpush1.msra.mxu0 0.0
        %305 = vmatprep.subr.mxu0 0.0
        %306 = vmatpush1.msra.mxu0 0.0
        %307 = vmatprep.subr.mxu0 0.0
        %308 = vmatpush1.msra.mxu0 0.0
        %309 = vmatprep.subr.mxu0 0.0
        %310 = vmatpush1.msra.mxu0 0.0
        %311 = vmatprep.subr.mxu0 0.0
        %312 = vmatpush1.msra.mxu0 0.0
        %313 = vmatprep.subr.mxu0 0.0
        %314 = vmatpush1.msra.mxu0 0.0
        %315 = vmatprep.subr.mxu0 0.0
        %316 = vmatpush1.msra.mxu0 0.0
        %317 = vmatprep.subr.mxu0 0.0
        %318 = vmatpush1.msra.mxu0 0.0
        %319 = vmatprep.subr.mxu0 0.0
        %320 = vmatpush1.msra.mxu0 0.0
        %321 = vmatprep.subr.mxu0 0.0
        %322 = vmatpush1.msra.mxu0 0.0
        %323 = vmatprep.subr.mxu0 0.0
        %324 = vmatpush1.msra.mxu0 0.0
        %325 = vmatprep.subr.mxu0 0.0
        %326 = vmatpush1.msra.mxu0 0.0
        %327 = vmatprep.subr.mxu0 0.0
        %328 = vmatpush1.msra.mxu0 0.0
        %329 = vmatprep.subr.mxu0 0.0
        %330 = vmatpush1.msra.mxu0 0.0
        %331 = vmatprep.subr.mxu0 0.0
        %332 = vmatpush1.msra.mxu0 0.0
        %333 = vmatprep.mubr.f32.mxu0 0.0
        %334 = vmatmul.mubr.f32.gmra.mrb[0].mxu0 %v262
        %v335 = vpop.f32.mrb[0].mxu0
        %v336 = vadd.f32 %v256, %v335
        %v337 = vpop.f32.mrb[0].mxu0
        %v338 = vadd.f32 %v256, %v337
        %339 = vdwg.mxu0
        %vm340 = vcmask 138240
        %341 = vst.msk [vmem:[#allocation2] sm:$0xff] %vm340, 0.0
        %vm342 = vcmask 277640
        %343 = vst.msk [vmem:[#allocation2 + $0x10] sm:$0xff] %vm342, 0.0
        %346 = vrot.lane.b32.xlu0 %v336, 17
        %v347 = vpop.permute.xlu0 %346
        %348 = vrot.lane.b32.xlu0 %v338, 17
        %v349 = vpop.permute.xlu0 %348
        %v350 = vsel %vm340, %v347, %v349
        %vm354 = vcmask 1047688
        %355 = vst.msk [vmem:[#allocation2] sm:$0xff] %vm354, %v347
        %356 = vst [vmem:[#allocation2 + $0x8] sm:$0xff] %v350
        %357 = vst.msk [vmem:[#allocation2 + $0x10] sm:$0xff] %vm340, %v349
        %v358 = vld [vmem:[#allocation2] sm:$0xff]
        %v359 = vld [vmem:[#allocation2 + $0x8] sm:$0xff]
        %v360 = vld [vmem:[%s3] sm:$0xff]
        %362 = vset.pattern.permute.xlu0 0
        %363 = vperm.xlu0 %362, %v360
        %v364 = vpop.permute.xlu0 %363
        %v366 = vmul.f32 %v358, %v364
        %v367 = vmul.f32 %v359, %v364
        %v368 = vld [vmem:[#allocation2] sm:$0xff]
        %v369 = vld [vmem:[#allocation2 + $0x8] sm:$0xff]
        %v370 = vld [vmem:[#allocation2 + $0x10] sm:$0xff]
        %371 = vset.pattern.permute.xlu0 3
        %372 = vperm.xlu0 %371, %v360
        %v373 = vpop.permute.xlu0 %372
        %v375 = vmul.f32 %v368, %v373
        %v376 = vmul.f32 %v369, %v373
        %v377 = vmul.f32 %v370, %v373
        %381 = vrot.lane.b32.xlu0 %v375, 112
        %v382 = vpop.permute.xlu0 %381
        %383 = vrot.lane.b32.xlu0 %v376, 112
        %v384 = vpop.permute.xlu0 %383
        %385 = vrot.lane.b32.xlu0 %v377, 112
        %v386 = vpop.permute.xlu0 %385
        %vm387 = vcmask 916480
        %v388 = vsel %vm387, %v382, %v384
        %v389 = vsel %vm387, %v384, %v386
        %v392 = vadd.f32 %v366, %v388
        %v393 = vadd.f32 %v367, %v389
        %394 = vset.pattern.permute.xlu0 6
        %395 = vperm.xlu0 %394, %v360
        %v396 = vpop.permute.xlu0 %395
        %v398 = vmul.f32 %v368, %v396
        %v399 = vmul.f32 %v369, %v396
        %v400 = vmul.f32 %v370, %v396
        %404 = vrot.lane.b32.xlu0 %v398, 96
        %v405 = vpop.permute.xlu0 %404
        %406 = vrot.lane.b32.xlu0 %v399, 96
        %v407 = vpop.permute.xlu0 %406
        %408 = vrot.lane.b32.xlu0 %v400, 96
        %v409 = vpop.permute.xlu0 %408
        %vm410 = vcmask 785408
        %v411 = vsel %vm410, %v405, %v407
        %v412 = vsel %vm410, %v407, %v409
        %v415 = vadd.f32 %v392, %v411
        %v416 = vadd.f32 %v393, %v412
        %v417 = vld [vmem:[%s5] ss:$4 sm:$0x3]
        %v419 = vlaneseq
        %v420 = vshrl.u32 %v419, 7
        %v421 = vsub.s32 0, %v420
        %v422 = vrot.slane %v417, %v421
        %v423 = vlaneseq
        %v424 = vshrl.u32 %v423, 7
        %v425 = vsub.s32 1, %v424
        %v426 = vrot.slane %v417, %v425
        %v429 = vmul.f32 %v415, %v422
        %v430 = vmul.f32 %v416, %v426
        %431 = vset.pattern.permute.xlu0 1
        %432 = vperm.xlu0 %431, %v360
        %v433 = vpop.permute.xlu0 %432
        %v435 = vmul.f32 %v368, %v433
        %v436 = vmul.f32 %v369, %v433
        %v437 = vmul.f32 %v370, %v433
        %438 = vset.pattern.permute.xlu0 4
        %439 = vperm.xlu0 %438, %v360
        %v440 = vpop.permute.xlu0 %439
        %v442 = vmul.f32 %v368, %v440
        %v443 = vmul.f32 %v369, %v440
        %v444 = vmul.f32 %v370, %v440
        %448 = vrot.lane.b32.xlu0 %v442, 112
        %v449 = vpop.permute.xlu0 %448
        %450 = vrot.lane.b32.xlu0 %v443, 112
        %v451 = vpop.permute.xlu0 %450
        %452 = vrot.lane.b32.xlu0 %v444, 112
        %v453 = vpop.permute.xlu0 %452
        %v454 = vsel %vm387, %v449, %v451
        %v455 = vsel %vm387, %v451, %v453
        %v459 = vadd.f32 %v435, %v454
        %v460 = vadd.f32 %v436, %v455
        %v461 = vadd.f32 %v437, %v453
        %462 = vset.pattern.permute.xlu0 7
        %463 = vperm.xlu0 %462, %v360
        %v464 = vpop.permute.xlu0 %463
        %v466 = vmul.f32 %v368, %v464
        %v467 = vmul.f32 %v369, %v464
        %v468 = vmul.f32 %v370, %v464
        %472 = vrot.lane.b32.xlu0 %v466, 96
        %v473 = vpop.permute.xlu0 %472
        %474 = vrot.lane.b32.xlu0 %v467, 96
        %v475 = vpop.permute.xlu0 %474
        %476 = vrot.lane.b32.xlu0 %v468, 96
        %v477 = vpop.permute.xlu0 %476
        %v478 = vsel %vm410, %v473, %v475
        %v479 = vsel %vm410, %v475, %v477
        %v483 = vadd.f32 %v459, %v478
        %v484 = vadd.f32 %v460, %v479
        %v485 = vadd.f32 %v461, %v477
        %489 = vrot.lane.b32.xlu0 %v483, 127
        %v490 = vpop.permute.xlu0 %489
        %491 = vrot.lane.b32.xlu0 %v484, 127
        %v492 = vpop.permute.xlu0 %491
        %493 = vrot.lane.b32.xlu0 %v485, 127
        %v494 = vpop.permute.xlu0 %493
        %vm495 = vcmask 1039360
        %v496 = vsel %vm495, %v490, %v492
        %v497 = vsel %vm495, %v492, %v494
        %v500 = vadd.f32 %v429, %v496
        %v501 = vadd.f32 %v430, %v497
        %502 = vset.pattern.permute.xlu0 2
        %503 = vperm.xlu0 %502, %v360
        %v504 = vpop.permute.xlu0 %503
        %v506 = vmul.f32 %v368, %v504
        %v507 = vmul.f32 %v369, %v504
        %v508 = vmul.f32 %v370, %v504
        %509 = vset.pattern.permute.xlu0 5
        %510 = vperm.xlu0 %509, %v360
        %v511 = vpop.permute.xlu0 %510
        %v513 = vmul.f32 %v368, %v511
        %v514 = vmul.f32 %v369, %v511
        %v515 = vmul.f32 %v370, %v511
        %519 = vrot.lane.b32.xlu0 %v513, 112
        %v520 = vpop.permute.xlu0 %519
        %521 = vrot.lane.b32.xlu0 %v514, 112
        %v522 = vpop.permute.xlu0 %521
        %523 = vrot.lane.b32.xlu0 %v515, 112
        %v524 = vpop.permute.xlu0 %523
        %v525 = vsel %vm387, %v520, %v522
        %v526 = vsel %vm387, %v522, %v524
        %v530 = vadd.f32 %v506, %v525
        %v531 = vadd.f32 %v507, %v526
        %v532 = vadd.f32 %v508, %v524
        %533 = vset.pattern.permute.xlu0 8
        %534 = vperm.xlu0 %533, %v360
        %v535 = vpop.permute.xlu0 %534
        %v537 = vmul.f32 %v368, %v535
        %v538 = vmul.f32 %v369, %v535
        %v539 = vmul.f32 %v370, %v535
        %543 = vrot.lane.b32.xlu0 %v537, 96
        %v544 = vpop.permute.xlu0 %543
        %545 = vrot.lane.b32.xlu0 %v538, 96
        %v546 = vpop.permute.xlu0 %545
        %547 = vrot.lane.b32.xlu0 %v539, 96
        %v548 = vpop.permute.xlu0 %547
        %v549 = vsel %vm410, %v544, %v546
        %v550 = vsel %vm410, %v546, %v548
        %v554 = vadd.f32 %v530, %v549
        %v555 = vadd.f32 %v531, %v550
        %v556 = vadd.f32 %v532, %v548
        %s557 = scalar_lea.vmem %s5, 2
        %v558 = vld [vmem:[%s557] ss:$4 sm:$0x3]
        %v560 = vlaneseq
        %v561 = vshrl.u32 %v560, 7
        %v562 = vsub.s32 0, %v561
        %v563 = vrot.slane %v558, %v562
        %v564 = vlaneseq
        %v565 = vshrl.u32 %v564, 7
        %v566 = vsub.s32 1, %v565
        %v567 = vrot.slane %v558, %v566
        %568 = vrot.lane.b32.xlu0 %v563, 2
        %v569 = vpop.permute.xlu0 %568
        %570 = vrot.lane.b32.xlu0 %v567, 2
        %v571 = vpop.permute.xlu0 %570
        %vm572 = vcmask 15360
        %v573 = vsel %vm572, %v569, %v571
        %v577 = vmul.f32 %v554, %v569
        %v578 = vmul.f32 %v555, %v573
        %v579 = vmul.f32 %v556, %v571
        %583 = vrot.lane.b32.xlu0 %v577, 126
        %v584 = vpop.permute.xlu0 %583
        %585 = vrot.lane.b32.xlu0 %v578, 126
        %v586 = vpop.permute.xlu0 %585
        %587 = vrot.lane.b32.xlu0 %v579, 126
        %v588 = vpop.permute.xlu0 %587
        %vm589 = vcmask 1031168
        %v590 = vsel %vm589, %v584, %v586
        %v591 = vsel %vm589, %v586, %v588
        %v594 = vadd.f32 %v500, %v590
        %v595 = vadd.f32 %v501, %v591
        %v596 = vld [vmem:[%s4] sm:$0xff]
        %598 = vset.pattern.permute.xlu0 0
        %599 = vperm.xlu0 %598, %v596
        %v600 = vpop.permute.xlu0 %599
        %v602 = vadd.f32 %v594, %v600
        %v603 = vadd.f32 %v595, %v600
        %v604 = vmax.f32 %v602, 0.0
        %v605 = vmax.f32 %v603, 0.0
        %606 = vst [vmem:[%s244] sm:$0xff] %v604
        %607 = vst [vmem:[%s244 + $0x8] sm:$0xff] %v605
        %s608 = sand.u32 %s159, 1
        %s609 = scalar_lea.sflag [#allocation4], %s608
        %s610 = sand.u32 %s159, 1
        %s611 = smul.addr %s610, 16
        %s612 = scalar_lea.vmem [#allocation3], %s611
        // Predicated region
        $region45: #{tpu_custom_call.1} parent=43 // pred_check
          %p613 = pneg %p169
        $region46: #{tpu_custom_call.1} parent=43 // pred_check_branch
          %615 = sbr.rel (%p613) target = $region48
        $region47: #{tpu_custom_call.1} parent=43 // pred_region
          %s617 = ssub.s32 256, 256
          %618 = vsyncadd %s609, %s617
          %s619 = smul.addr %s20, 2
          %s620 = smul.addr %s619, 128
          %s621 = scalar_lea.hbm %s6, %s620
          %s623 = sshll.u32 %s612, 4
          %s624 = int_to_ptr.vmem [resolvable:$true] %s623
          %626 = dma.vmem_to_hbm [thread:$0]  %s624, 256, %s621, %s609
        $region48: #{tpu_custom_call.1} parent=43 // pred_fallthru
          _
      $region44: #{tpu_custom_call.1} parent=5 // pred_fallthru
        _
      %p627 = scmp.le.s32.totalorder 2, %s15
      // Predicated region
      $region49: #{tpu_custom_call.1} parent=5 // pred_check
        %p628 = pneg %p627
      $region50: #{tpu_custom_call.1} parent=5 // pred_check_branch
        %630 = sbr.rel (%p628) target = $region52
      $region51: #{tpu_custom_call.1} parent=5 // pred_region
        %s631 = ssub.s32 %s15, 2
        // Predicated region
        $region53: #{tpu_custom_call.1} parent=51 // pred_check
          %p632 = pneg %p175
        $region54: #{tpu_custom_call.1} parent=51 // pred_check_branch
          %634 = sbr.rel (%p632) target = $region56
        $region55: #{tpu_custom_call.1} parent=51 // pred_region
          %s635 = sand.u32 %s160, 1
          %s636 = scalar_lea.sflag [#allocation4], %s635
          %s637 = sand.u32 %s160, 1
          %s638 = smul.addr %s637, 16
          %s639 = scalar_lea.vmem [#allocation3], %s638
          %640 = dma.done %s636, 256
        $region56: #{tpu_custom_call.1} parent=51 // pred_fallthru
          _
      $region52: #{tpu_custom_call.1} parent=5 // pred_fallthru
        _
    $region6: #{tpu_custom_call.1} parent=1 // loop_footer
      %s19 = sadd.s32 1, %s15
    $region7: #{tpu_custom_call.1} parent=1 // loop_footer_branch
      %14 = sbr.rel target = $region3
    $region8: #{tpu_custom_call.1} parent=1 // loop_exit
      _
    %641 = vsyncpa [#allocation4], 1
    %s642 = scalar_lea.sflag [#allocation4], 1
    %643 = vsyncpa %s642, 1

</llo_original>
